<compile_context>
chip_gen: v5e
topology: v5e:2x2
jax: 0.10.0
libtpu: 0.0.40
codegen_flags: <defaults>
</compile_context>

<pallas_src>
import jax
import jax.numpy as jnp
import numpy as np
from jax.experimental import pallas as pl
from jax.experimental.pallas import tpu as pltpu


def attention_kernel(x_ref, wblk_ref, exp_ref, b_ref, o_ref):
    # x_ref: [T, B*N*D]  (full array, single invocation)
    x = x_ref[...]                                                   # [T, BND]

    # per-(b, n) logits via block-diagonal weight: [T, BND] @ [BND, BN] -> [T, BN]
    logits = jnp.dot(x, wblk_ref[...],
                     preferred_element_type=jnp.float32) + b_ref[0]
    s = jnp.tanh(logits)                                             # [T, BN]

    # softmax over the time axis (axis 0)
    m = jnp.max(s, axis=0, keepdims=True)                            # [1, BN]
    e = jnp.exp(s - m)                                               # [T, BN]
    alfa = e / jnp.sum(e, axis=0, keepdims=True)                     # [T, BN]

    # broadcast alfa[t, bn] across the D lanes of node bn: [T, BN] @ [BN, BND]
    alfa_nd = jnp.dot(alfa, exp_ref[...],
                      preferred_element_type=jnp.float32)            # [T, BND]
    out = jnp.sum(alfa_nd * x.astype(jnp.float32), axis=0,
                  keepdims=True)                                     # [1, BND]
    o_ref[...] = out.astype(o_ref.dtype)


def attention(x, w, b):
    """x: [T, B, N, D]; w: [D] (row of nn.Linear(D, 1).weight); b: scalar bias.

    Returns [B, N, D] = sum_t softmax_t(tanh(x @ w + b)) * x.
    """
    T, B, N, D = x.shape
    BN = B * N
    BND = BN * D

    # Free contiguous reshape (no transpose, no extra HBM round-trip):
    # xf[t, b*N*D + n*D + d] = x[t, b, n, d]
    xf = x.reshape(T, BND)                                           # [T, BND]

    # Block-diagonal helpers built once in the wrapper (tiny at this scale):
    #   wblk[bn*D + d, bn'] = (bn == bn') * w[d]   -> logit reduction as a matmul
    #   expand[bn, bn'*D + d] = (bn == bn')        -> alfa broadcast as a matmul
    # TODO(synk): these are O((B*N)^2 * D) fp32; for production-scale N tile the
    # node axis in a grid (or replace the expand-matmul with lane replication)
    # before this hits v7x's 64 MiB VMEM ceiling.
    eye_bn = jnp.eye(BN, dtype=x.dtype)
    wblk = jnp.kron(eye_bn, w.reshape(D, 1)).astype(x.dtype)         # [BND, BN]
    expand = jnp.kron(eye_bn, jnp.ones((1, D), dtype=x.dtype))       # [BN, BND]
    b_arr = jnp.asarray(b, dtype=jnp.float32).reshape(1)             # SMEM scalar

    out = pl.pallas_call(
        attention_kernel,
        out_shape=jax.ShapeDtypeStruct((1, BND), x.dtype),
        in_specs=[
            pl.BlockSpec(memory_space=pltpu.MemorySpace.VMEM),       # x slab
            pl.BlockSpec(memory_space=pltpu.MemorySpace.VMEM),       # block-diag W
            pl.BlockSpec(memory_space=pltpu.MemorySpace.VMEM),       # broadcast map
            pl.BlockSpec(memory_space=pltpu.MemorySpace.SMEM),       # bias scalar
        ],
        out_specs=pl.BlockSpec(memory_space=pltpu.MemorySpace.VMEM),
    )(xf, wblk, expand, b_arr)
    return out.reshape(B, N, D)


def attention_ref(x, w, b):
    """Pure-JAX reference mirroring the PyTorch forward exactly."""
    logits = jnp.einsum('tbnd,d->tbn', x, w) + b                     # [T, B, N]
    alfa = jax.nn.softmax(jnp.tanh(logits)[..., None], axis=0)       # [T, B, N, 1]
    return jnp.sum(alfa * x, axis=0)                                 # [B, N, D]


if __name__ == "__main__":
    T, B, N, D = 8, 2, 16, 32

    key = jax.random.PRNGKey(0)
    kx, kw, kb = jax.random.split(key, 3)

    x = jax.random.normal(kx, (T, B, N, D), dtype=jnp.float32)
    # nn.Linear(D, 1) init: uniform(-1/sqrt(D), 1/sqrt(D))
    lim = 1.0 / np.sqrt(D)
    w = jax.random.uniform(kw, (D,), minval=-lim, maxval=lim, dtype=jnp.float32)
    b = jax.random.uniform(kb, (), minval=-lim, maxval=lim, dtype=jnp.float32)

    out = attention(x, w, b)
    out = jax.block_until_ready(out)

    ref = attention_ref(x, w, b)
    np.testing.assert_allclose(np.asarray(out), np.asarray(ref),
                               rtol=1e-5, atol=1e-5)
    print("KERNEL_OK")
</pallas_src>

<mosaic_0001>
module attributes {stable_mosaic.version = 11 : i64} {
  func.func @attention_kernel(%arg0: memref<8x1024xf32, #tpu.memory_space<vmem>>, %arg1: memref<1024x32xf32, #tpu.memory_space<vmem>>, %arg2: memref<32x1024xf32, #tpu.memory_space<vmem>>, %arg3: memref<1xf32, #tpu.memory_space<smem>>, %arg4: memref<1x1024xf32, #tpu.memory_space<vmem>>) attributes {dimension_semantics = [], scalar_prefetch = 0 : i64, scratch_operands = 0 : i64, tpu.core_type = #tpu.core_type<tc>} {
    %c0 = arith.constant 0 : index
    %c0_0 = arith.constant 0 : index
    %0 = vector.load %arg0[%c0, %c0_0] : memref<8x1024xf32, #tpu.memory_space<vmem>>, vector<8x1024xf32>
    %c0_1 = arith.constant 0 : index
    %c0_2 = arith.constant 0 : index
    %1 = vector.load %arg1[%c0_1, %c0_2] : memref<1024x32xf32, #tpu.memory_space<vmem>>, vector<1024x32xf32>
    %cst = arith.constant dense<0.000000e+00> : vector<8x32xf32>
    %2 = tpu.matmul %0, %1, %cst {dimension_numbers = #tpu.dot_dimension_numbers<[1], [0], [0], [1], [0, 0, 1, 1], [], []>} : vector<8x1024xf32>, vector<1024x32xf32>, vector<8x32xf32> -> vector<8x32xf32>
    %c0_3 = arith.constant 0 : index
    %3 = memref.load %arg3[%c0_3] : memref<1xf32, #tpu.memory_space<smem>>
    %4 = vector.broadcast %3 : f32 to vector<8x32xf32>
    %5 = arith.addf %2, %4 : vector<8x32xf32>
    %6 = math.tanh %5 : vector<8x32xf32>
    %cst_4 = arith.constant dense<0xFF800000> : vector<32xf32>
    %7 = vector.multi_reduction <maximumf>, %6, %cst_4 [0] : vector<8x32xf32> to vector<32xf32>
    %8 = vector.shape_cast %7 : vector<32xf32> to vector<1x32xf32>
    %9 = vector.broadcast %8 : vector<1x32xf32> to vector<8x32xf32>
    %10 = arith.subf %6, %9 : vector<8x32xf32>
    %11 = math.exp %10 : vector<8x32xf32>
    %cst_5 = arith.constant dense<0.000000e+00> : vector<32xf32>
    %12 = vector.multi_reduction <add>, %11, %cst_5 [0] : vector<8x32xf32> to vector<32xf32>
    %13 = vector.shape_cast %12 : vector<32xf32> to vector<1x32xf32>
    %14 = vector.broadcast %13 : vector<1x32xf32> to vector<8x32xf32>
    %15 = arith.divf %11, %14 : vector<8x32xf32>
    %c0_6 = arith.constant 0 : index
    %c0_7 = arith.constant 0 : index
    %16 = vector.load %arg2[%c0_6, %c0_7] : memref<32x1024xf32, #tpu.memory_space<vmem>>, vector<32x1024xf32>
    %cst_8 = arith.constant dense<0.000000e+00> : vector<8x1024xf32>
    %17 = tpu.matmul %15, %16, %cst_8 {dimension_numbers = #tpu.dot_dimension_numbers<[1], [0], [0], [1], [0, 0, 1, 1], [], []>} : vector<8x32xf32>, vector<32x1024xf32>, vector<8x1024xf32> -> vector<8x1024xf32>
    %18 = arith.mulf %17, %0 : vector<8x1024xf32>
    %cst_9 = arith.constant dense<0.000000e+00> : vector<1024xf32>
    %19 = vector.multi_reduction <add>, %18, %cst_9 [0] : vector<8x1024xf32> to vector<1024xf32>
    %20 = vector.shape_cast %19 : vector<1024xf32> to vector<1x1024xf32>
    %c0_10 = arith.constant 0 : index
    %c0_11 = arith.constant 0 : index
    %21 = vector.load %arg4[%c0_10, %c0_11] : memref<1x1024xf32, #tpu.memory_space<vmem>>, vector<1x1024xf32>
    tpu.vector_store %arg4[%c0_10, %c0_11], %20 {strides = array<i32>} : memref<1x1024xf32, #tpu.memory_space<vmem>>, vector<1x1024xf32>,
    return
  }
}

</mosaic_0001>

<llo_original>
// kernel: tpu_custom_call.1
$region0: #{tpu_custom_call.1}
  #allocation0 [shape = 'u32[]', space=smem, size = 0x4, offset = 0x4, fixed_abs, tag = 'smem constant byte address 0x4 - core index']
  #allocation1 [shape = 'u32[72,128]{1,0:T(1,128)}', space=vmem, size = 0x9000, scoped, tag = 'internal scratch']
  #allocation2 [shape = 'f32[1]{0:T(128)S(6)}', space=smem, size = 0x200, scoped, tag = 'scoped memory for tpu_custom_call.1']
  %s0 = inlined_call_operand.vmem [shape: f32[8,1024], index: 0, kind: input, shape index: {}]
  %s1 = inlined_call_operand.vmem [shape: f32[1024,32], index: 1, kind: input, shape index: {}]
  %s2 = inlined_call_operand.vmem [shape: f32[32,1024], index: 2, kind: input, shape index: {}]
  %s3 = inlined_call_operand.<no memory space> [shape: f32[1], index: 3, kind: input, shape index: {}]
  %s4 = inlined_call_operand.hbm [shape: f32[1,1024], index: 4, kind: output, shape index: {}]
  %s5 = sld [smem:[#allocation0]]
  $region26: #{tpu_custom_call.1} parent=0
    _
  %s7 = ssub.s32 1, %s5
  %s8 = scalar_select 0, %s7, %s5
  %9 = sst [smem:[#allocation2]] %s3
  $region1: #{tpu_custom_call.1} parent=0
    #allocation3 [shape = 'u8[4096]{0}', space=vmem, size = 0x1000, scoped, tag = 'output window, operand 0, single buffered']
    #allocation4 [shape = 's32[1]{0}', space=sflag, size = 0x4, scoped, tag = 'scoped memory for tpu_custom_call.1']
    %10 = vsyncpa [#allocation4], 0
    // Predicated region
    $region2: #{tpu_custom_call.1} parent=1 // pred_check
      _
    $region3: #{tpu_custom_call.1} parent=1 // pred_check_branch
      %12 = sbr.rel (0) target = $region5
    $region4: #{tpu_custom_call.1} parent=1 // pred_region
      _
    $region5: #{tpu_custom_call.1} parent=1 // pred_fallthru
      _
    // Predicated region
    $region6: #{tpu_custom_call.1} parent=1 // pred_check
      _
    $region7: #{tpu_custom_call.1} parent=1 // pred_check_branch
      %14 = sbr.rel (0) target = $region9
    $region8: #{tpu_custom_call.1} parent=1 // pred_region
      _
    $region9: #{tpu_custom_call.1} parent=1 // pred_fallthru
      _
    // Predicated region
    $region10: #{tpu_custom_call.1} parent=1 // pred_check
      _
    $region11: #{tpu_custom_call.1} parent=1 // pred_check_branch
      %16 = sbr.rel (0) target = $region13
    $region12: #{tpu_custom_call.1} parent=1 // pred_region
      _
    $region13: #{tpu_custom_call.1} parent=1 // pred_fallthru
      _
    // Predicated region
    $region14: #{tpu_custom_call.1} parent=1 // pred_check
      _
    $region15: #{tpu_custom_call.1} parent=1 // pred_check_branch
      %18 = sbr.rel (0) target = $region17
    $region16: #{tpu_custom_call.1} parent=1 // pred_region
      _
    $region17: #{tpu_custom_call.1} parent=1 // pred_fallthru
      _
    %v19 = vld [vmem:[%s0] sm:$0xff]
    %v20 = vld [vmem:[%s0 + $0x8] sm:$0xff]
    %v21 = vld [vmem:[%s0 + $0x10] sm:$0xff]
    %v22 = vld [vmem:[%s0 + $0x18] sm:$0xff]
    %v23 = vld [vmem:[%s0 + $0x20] sm:$0xff]
    %v24 = vld [vmem:[%s0 + $0x28] sm:$0xff]
    %v25 = vld [vmem:[%s0 + $0x30] sm:$0xff]
    %v26 = vld [vmem:[%s0 + $0x38] sm:$0xff]
    %v27 = vld [vmem:[%s1] sm:$0xff]
    %v28 = vld [vmem:[%s1 + $0x8] sm:$0xff]
    %v29 = vld [vmem:[%s1 + $0x10] sm:$0xff]
    %v30 = vld [vmem:[%s1 + $0x18] sm:$0xff]
    %v31 = vld [vmem:[%s1 + $0x20] sm:$0xff]
    %v32 = vld [vmem:[%s1 + $0x28] sm:$0xff]
    %v33 = vld [vmem:[%s1 + $0x30] sm:$0xff]
    %v34 = vld [vmem:[%s1 + $0x38] sm:$0xff]
    %v35 = vld [vmem:[%s1 + $0x40] sm:$0xff]
    %v36 = vld [vmem:[%s1 + $0x48] sm:$0xff]
    %v37 = vld [vmem:[%s1 + $0x50] sm:$0xff]
    %v38 = vld [vmem:[%s1 + $0x58] sm:$0xff]
    %v39 = vld [vmem:[%s1 + $0x60] sm:$0xff]
    %v40 = vld [vmem:[%s1 + $0x68] sm:$0xff]
    %v41 = vld [vmem:[%s1 + $0x70] sm:$0xff]
    %v42 = vld [vmem:[%s1 + $0x78] sm:$0xff]
    %v43 = vld [vmem:[%s1 + $0x80] sm:$0xff]
    %v44 = vld [vmem:[%s1 + $0x88] sm:$0xff]
    %v45 = vld [vmem:[%s1 + $0x90] sm:$0xff]
    %v46 = vld [vmem:[%s1 + $0x98] sm:$0xff]
    %v47 = vld [vmem:[%s1 + $0xa0] sm:$0xff]
    %v48 = vld [vmem:[%s1 + $0xa8] sm:$0xff]
    %v49 = vld [vmem:[%s1 + $0xb0] sm:$0xff]
    %v50 = vld [vmem:[%s1 + $0xb8] sm:$0xff]
    %v51 = vld [vmem:[%s1 + $0xc0] sm:$0xff]
    %v52 = vld [vmem:[%s1 + $0xc8] sm:$0xff]
    %v53 = vld [vmem:[%s1 + $0xd0] sm:$0xff]
    %v54 = vld [vmem:[%s1 + $0xd8] sm:$0xff]
    %v55 = vld [vmem:[%s1 + $0xe0] sm:$0xff]
    %v56 = vld [vmem:[%s1 + $0xe8] sm:$0xff]
    %v57 = vld [vmem:[%s1 + $0xf0] sm:$0xff]
    %v58 = vld [vmem:[%s1 + $0xf8] sm:$0xff]
    %v59 = vld [vmem:[%s1 + $0x100] sm:$0xff]
    %v60 = vld [vmem:[%s1 + $0x108] sm:$0xff]
    %v61 = vld [vmem:[%s1 + $0x110] sm:$0xff]
    %v62 = vld [vmem:[%s1 + $0x118] sm:$0xff]
    %v63 = vld [vmem:[%s1 + $0x120] sm:$0xff]
    %v64 = vld [vmem:[%s1 + $0x128] sm:$0xff]
    %v65 = vld [vmem:[%s1 + $0x130] sm:$0xff]
    %v66 = vld [vmem:[%s1 + $0x138] sm:$0xff]
    %v67 = vld [vmem:[%s1 + $0x140] sm:$0xff]
    %v68 = vld [vmem:[%s1 + $0x148] sm:$0xff]
    %v69 = vld [vmem:[%s1 + $0x150] sm:$0xff]
    %v70 = vld [vmem:[%s1 + $0x158] sm:$0xff]
    %v71 = vld [vmem:[%s1 + $0x160] sm:$0xff]
    %v72 = vld [vmem:[%s1 + $0x168] sm:$0xff]
    %v73 = vld [vmem:[%s1 + $0x170] sm:$0xff]
    %v74 = vld [vmem:[%s1 + $0x178] sm:$0xff]
    %v75 = vld [vmem:[%s1 + $0x180] sm:$0xff]
    %v76 = vld [vmem:[%s1 + $0x188] sm:$0xff]
    %v77 = vld [vmem:[%s1 + $0x190] sm:$0xff]
    %v78 = vld [vmem:[%s1 + $0x198] sm:$0xff]
    %v79 = vld [vmem:[%s1 + $0x1a0] sm:$0xff]
    %v80 = vld [vmem:[%s1 + $0x1a8] sm:$0xff]
    %v81 = vld [vmem:[%s1 + $0x1b0] sm:$0xff]
    %v82 = vld [vmem:[%s1 + $0x1b8] sm:$0xff]
    %v83 = vld [vmem:[%s1 + $0x1c0] sm:$0xff]
    %v84 = vld [vmem:[%s1 + $0x1c8] sm:$0xff]
    %v85 = vld [vmem:[%s1 + $0x1d0] sm:$0xff]
    %v86 = vld [vmem:[%s1 + $0x1d8] sm:$0xff]
    %v87 = vld [vmem:[%s1 + $0x1e0] sm:$0xff]
    %v88 = vld [vmem:[%s1 + $0x1e8] sm:$0xff]
    %v89 = vld [vmem:[%s1 + $0x1f0] sm:$0xff]
    %v90 = vld [vmem:[%s1 + $0x1f8] sm:$0xff]
    %v91 = vld [vmem:[%s1 + $0x200] sm:$0xff]
    %v92 = vld [vmem:[%s1 + $0x208] sm:$0xff]
    %v93 = vld [vmem:[%s1 + $0x210] sm:$0xff]
    %v94 = vld [vmem:[%s1 + $0x218] sm:$0xff]
    %v95 = vld [vmem:[%s1 + $0x220] sm:$0xff]
    %v96 = vld [vmem:[%s1 + $0x228] sm:$0xff]
    %v97 = vld [vmem:[%s1 + $0x230] sm:$0xff]
    %v98 = vld [vmem:[%s1 + $0x238] sm:$0xff]
    %v99 = vld [vmem:[%s1 + $0x240] sm:$0xff]
    %v100 = vld [vmem:[%s1 + $0x248] sm:$0xff]
    %v101 = vld [vmem:[%s1 + $0x250] sm:$0xff]
    %v102 = vld [vmem:[%s1 + $0x258] sm:$0xff]
    %v103 = vld [vmem:[%s1 + $0x260] sm:$0xff]
    %v104 = vld [vmem:[%s1 + $0x268] sm:$0xff]
    %v105 = vld [vmem:[%s1 + $0x270] sm:$0xff]
    %v106 = vld [vmem:[%s1 + $0x278] sm:$0xff]
    %v107 = vld [vmem:[%s1 + $0x280] sm:$0xff]
    %v108 = vld [vmem:[%s1 + $0x288] sm:$0xff]
    %v109 = vld [vmem:[%s1 + $0x290] sm:$0xff]
    %v110 = vld [vmem:[%s1 + $0x298] sm:$0xff]
    %v111 = vld [vmem:[%s1 + $0x2a0] sm:$0xff]
    %v112 = vld [vmem:[%s1 + $0x2a8] sm:$0xff]
    %v113 = vld [vmem:[%s1 + $0x2b0] sm:$0xff]
    %v114 = vld [vmem:[%s1 + $0x2b8] sm:$0xff]
    %v115 = vld [vmem:[%s1 + $0x2c0] sm:$0xff]
    %v116 = vld [vmem:[%s1 + $0x2c8] sm:$0xff]
    %v117 = vld [vmem:[%s1 + $0x2d0] sm:$0xff]
    %v118 = vld [vmem:[%s1 + $0x2d8] sm:$0xff]
    %v119 = vld [vmem:[%s1 + $0x2e0] sm:$0xff]
    %v120 = vld [vmem:[%s1 + $0x2e8] sm:$0xff]
    %v121 = vld [vmem:[%s1 + $0x2f0] sm:$0xff]
    %v122 = vld [vmem:[%s1 + $0x2f8] sm:$0xff]
    %v123 = vld [vmem:[%s1 + $0x300] sm:$0xff]
    %v124 = vld [vmem:[%s1 + $0x308] sm:$0xff]
    %v125 = vld [vmem:[%s1 + $0x310] sm:$0xff]
    %v126 = vld [vmem:[%s1 + $0x318] sm:$0xff]
    %v127 = vld [vmem:[%s1 + $0x320] sm:$0xff]
    %v128 = vld [vmem:[%s1 + $0x328] sm:$0xff]
    %v129 = vld [vmem:[%s1 + $0x330] sm:$0xff]
    %v130 = vld [vmem:[%s1 + $0x338] sm:$0xff]
    %v131 = vld [vmem:[%s1 + $0x340] sm:$0xff]
    %v132 = vld [vmem:[%s1 + $0x348] sm:$0xff]
    %v133 = vld [vmem:[%s1 + $0x350] sm:$0xff]
    %v134 = vld [vmem:[%s1 + $0x358] sm:$0xff]
    %v135 = vld [vmem:[%s1 + $0x360] sm:$0xff]
    %v136 = vld [vmem:[%s1 + $0x368] sm:$0xff]
    %v137 = vld [vmem:[%s1 + $0x370] sm:$0xff]
    %v138 = vld [vmem:[%s1 + $0x378] sm:$0xff]
    %v139 = vld [vmem:[%s1 + $0x380] sm:$0xff]
    %v140 = vld [vmem:[%s1 + $0x388] sm:$0xff]
    %v141 = vld [vmem:[%s1 + $0x390] sm:$0xff]
    %v142 = vld [vmem:[%s1 + $0x398] sm:$0xff]
    %v143 = vld [vmem:[%s1 + $0x3a0] sm:$0xff]
    %v144 = vld [vmem:[%s1 + $0x3a8] sm:$0xff]
    %v145 = vld [vmem:[%s1 + $0x3b0] sm:$0xff]
    %v146 = vld [vmem:[%s1 + $0x3b8] sm:$0xff]
    %v147 = vld [vmem:[%s1 + $0x3c0] sm:$0xff]
    %v148 = vld [vmem:[%s1 + $0x3c8] sm:$0xff]
    %v149 = vld [vmem:[%s1 + $0x3d0] sm:$0xff]
    %v150 = vld [vmem:[%s1 + $0x3d8] sm:$0xff]
    %v151 = vld [vmem:[%s1 + $0x3e0] sm:$0xff]
    %v152 = vld [vmem:[%s1 + $0x3e8] sm:$0xff]
    %v153 = vld [vmem:[%s1 + $0x3f0] sm:$0xff]
    %v154 = vld [vmem:[%s1 + $0x3f8] sm:$0xff]
    %s155 = sld [smem:[#allocation2]]
    %v156 = vstv %s155
    %157 = vmatpush.msra.mxu0 %v42
    %158 = vmatpush.msra.mxu0 %v41
    %159 = vmatpush.msra.mxu0 %v40
    %160 = vmatpush.msra.mxu0 %v39
    %161 = vmatpush.msra.mxu0 %v38
    %162 = vmatpush.msra.mxu0 %v37
    %163 = vmatpush.msra.mxu0 %v36
    %164 = vmatpush.msra.mxu0 %v35
    %165 = vmatpush.msra.mxu0 %v34
    %166 = vmatpush.msra.mxu0 %v33
    %167 = vmatpush.msra.mxu0 %v32
    %168 = vmatpush.msra.mxu0 %v31
    %169 = vmatpush.msra.mxu0 %v30
    %170 = vmatpush.msra.mxu0 %v29
    %171 = vmatpush.msra.mxu0 %v28
    %172 = vmatpush.msra.mxu0 %v27
    %173 = vmatmul.f32.gmra.mxu0 %v19
    %v174 = vpop.f32.mrf.mxu0
    %v175 = vadd.f32 %v156, %v174
    %176 = vdwg.mxu0
    %177 = vmatpush.msra.mxu0 %v58
    %178 = vmatpush.msra.mxu0 %v57
    %179 = vmatpush.msra.mxu0 %v56
    %180 = vmatpush.msra.mxu0 %v55
    %181 = vmatpush.msra.mxu0 %v54
    %182 = vmatpush.msra.mxu0 %v53
    %183 = vmatpush.msra.mxu0 %v52
    %184 = vmatpush.msra.mxu0 %v51
    %185 = vmatpush.msra.mxu0 %v50
    %186 = vmatpush.msra.mxu0 %v49
    %187 = vmatpush.msra.mxu0 %v48
    %188 = vmatpush.msra.mxu0 %v47
    %189 = vmatpush.msra.mxu0 %v46
    %190 = vmatpush.msra.mxu0 %v45
    %191 = vmatpush.msra.mxu0 %v44
    %192 = vmatpush.msra.mxu0 %v43
    %193 = vmatmul.f32.gmra.mxu0 %v20
    %v194 = vpop.f32.mrf.mxu0
    %v195 = vadd.f32 %v175, %v194
    %196 = vdwg.mxu0
    %197 = vmatpush.msra.mxu0 %v74
    %198 = vmatpush.msra.mxu0 %v73
    %199 = vmatpush.msra.mxu0 %v72
    %200 = vmatpush.msra.mxu0 %v71
    %201 = vmatpush.msra.mxu0 %v70
    %202 = vmatpush.msra.mxu0 %v69
    %203 = vmatpush.msra.mxu0 %v68
    %204 = vmatpush.msra.mxu0 %v67
    %205 = vmatpush.msra.mxu0 %v66
    %206 = vmatpush.msra.mxu0 %v65
    %207 = vmatpush.msra.mxu0 %v64
    %208 = vmatpush.msra.mxu0 %v63
    %209 = vmatpush.msra.mxu0 %v62
    %210 = vmatpush.msra.mxu0 %v61
    %211 = vmatpush.msra.mxu0 %v60
    %212 = vmatpush.msra.mxu0 %v59
    %213 = vmatmul.f32.gmra.mxu0 %v21
    %v214 = vpop.f32.mrf.mxu0
    %v215 = vadd.f32 %v195, %v214
    %216 = vdwg.mxu0
    %217 = vmatpush.msra.mxu0 %v90
    %218 = vmatpush.msra.mxu0 %v89
    %219 = vmatpush.msra.mxu0 %v88
    %220 = vmatpush.msra.mxu0 %v87
    %221 = vmatpush.msra.mxu0 %v86
    %222 = vmatpush.msra.mxu0 %v85
    %223 = vmatpush.msra.mxu0 %v84
    %224 = vmatpush.msra.mxu0 %v83
    %225 = vmatpush.msra.mxu0 %v82
    %226 = vmatpush.msra.mxu0 %v81
    %227 = vmatpush.msra.mxu0 %v80
    %228 = vmatpush.msra.mxu0 %v79
    %229 = vmatpush.msra.mxu0 %v78
    %230 = vmatpush.msra.mxu0 %v77
    %231 = vmatpush.msra.mxu0 %v76
    %232 = vmatpush.msra.mxu0 %v75
    %233 = vmatmul.f32.gmra.mxu0 %v22
    %v234 = vpop.f32.mrf.mxu0
    %v235 = vadd.f32 %v215, %v234
    %236 = vdwg.mxu0
    %237 = vmatpush.msra.mxu0 %v106
    %238 = vmatpush.msra.mxu0 %v105
    %239 = vmatpush.msra.mxu0 %v104
    %240 = vmatpush.msra.mxu0 %v103
    %241 = vmatpush.msra.mxu0 %v102
    %242 = vmatpush.msra.mxu0 %v101
    %243 = vmatpush.msra.mxu0 %v100
    %244 = vmatpush.msra.mxu0 %v99
    %245 = vmatpush.msra.mxu0 %v98
    %246 = vmatpush.msra.mxu0 %v97
    %247 = vmatpush.msra.mxu0 %v96
    %248 = vmatpush.msra.mxu0 %v95
    %249 = vmatpush.msra.mxu0 %v94
    %250 = vmatpush.msra.mxu0 %v93
    %251 = vmatpush.msra.mxu0 %v92
    %252 = vmatpush.msra.mxu0 %v91
    %253 = vmatmul.f32.gmra.mxu0 %v23
    %v254 = vpop.f32.mrf.mxu0
    %v255 = vadd.f32 %v235, %v254
    %256 = vdwg.mxu0
    %257 = vmatpush.msra.mxu0 %v122
    %258 = vmatpush.msra.mxu0 %v121
    %259 = vmatpush.msra.mxu0 %v120
    %260 = vmatpush.msra.mxu0 %v119
    %261 = vmatpush.msra.mxu0 %v118
    %262 = vmatpush.msra.mxu0 %v117
    %263 = vmatpush.msra.mxu0 %v116
    %264 = vmatpush.msra.mxu0 %v115
    %265 = vmatpush.msra.mxu0 %v114
    %266 = vmatpush.msra.mxu0 %v113
    %267 = vmatpush.msra.mxu0 %v112
    %268 = vmatpush.msra.mxu0 %v111
    %269 = vmatpush.msra.mxu0 %v110
    %270 = vmatpush.msra.mxu0 %v109
    %271 = vmatpush.msra.mxu0 %v108
    %272 = vmatpush.msra.mxu0 %v107
    %273 = vmatmul.f32.gmra.mxu0 %v24
    %v274 = vpop.f32.mrf.mxu0
    %v275 = vadd.f32 %v255, %v274
    %276 = vdwg.mxu0
    %277 = vmatpush.msra.mxu0 %v138
    %278 = vmatpush.msra.mxu0 %v137
    %279 = vmatpush.msra.mxu0 %v136
    %280 = vmatpush.msra.mxu0 %v135
    %281 = vmatpush.msra.mxu0 %v134
    %282 = vmatpush.msra.mxu0 %v133
    %283 = vmatpush.msra.mxu0 %v132
    %284 = vmatpush.msra.mxu0 %v131
    %285 = vmatpush.msra.mxu0 %v130
    %286 = vmatpush.msra.mxu0 %v129
    %287 = vmatpush.msra.mxu0 %v128
    %288 = vmatpush.msra.mxu0 %v127
    %289 = vmatpush.msra.mxu0 %v126
    %290 = vmatpush.msra.mxu0 %v125
    %291 = vmatpush.msra.mxu0 %v124
    %292 = vmatpush.msra.mxu0 %v123
    %293 = vmatmul.f32.gmra.mxu0 %v25
    %v294 = vpop.f32.mrf.mxu0
    %v295 = vadd.f32 %v275, %v294
    %296 = vdwg.mxu0
    %297 = vmatpush.msra.mxu0 %v154
    %298 = vmatpush.msra.mxu0 %v153
    %299 = vmatpush.msra.mxu0 %v152
    %300 = vmatpush.msra.mxu0 %v151
    %301 = vmatpush.msra.mxu0 %v150
    %302 = vmatpush.msra.mxu0 %v149
    %303 = vmatpush.msra.mxu0 %v148
    %304 = vmatpush.msra.mxu0 %v147
    %305 = vmatpush.msra.mxu0 %v146
    %306 = vmatpush.msra.mxu0 %v145
    %307 = vmatpush.msra.mxu0 %v144
    %308 = vmatpush.msra.mxu0 %v143
    %309 = vmatpush.msra.mxu0 %v142
    %310 = vmatpush.msra.mxu0 %v141
    %311 = vmatpush.msra.mxu0 %v140
    %312 = vmatpush.msra.mxu0 %v139
    %313 = vmatmul.f32.gmra.mxu0 %v26
    %v314 = vpop.f32.mrf.mxu0
    %v315 = vadd.f32 %v295, %v314
    %316 = vdwg.mxu0
    %v317 = vtanh.pop %v315
    %vm318 = vcmask 261120
    %v319 = vsel %vm318, %v317, -inf
    %v320 = vrot.slane %v319, 4
    %v321 = vmax.f32 %v319, %v320
    %v322 = vrot.slane %v321, 2
    %v323 = vmax.f32 %v321, %v322
    %v324 = vrot.slane %v323, 1
    %v325 = vmax.f32 %v323, %v324
    %v326 = vsub.f32 %v317, %v325
    %v327 = vmul.f32 %v326, 1.442695
    %v328 = vpow.pop %v327
    %v329 = vsel %vm318, %v328, 0.0
    %v330 = vrot.slane %v329, 4
    %v331 = vadd.f32 %v329, %v330
    %v332 = vrot.slane %v331, 2
    %v333 = vadd.f32 %v331, %v332
    %v334 = vrot.slane %v333, 1
    %v335 = vadd.f32 %v333, %v334
    %v336 = vrcp.pop %v335
    %v337 = vmul.f32 %v335, %v336
    %v338 = vsub.f32 1.0, %v337
    %v339 = vmul.f32 %v336, %v338
    %v340 = vadd.f32 %v336, %v339
    %vm341 = vweird.f32 %v335
    %vm342 = vweird.f32 %v336
    %vm343 = vmor %vm341, %vm342
    %v344 = vsel %vm343, %v336, %v340
    %v345 = vand.u32 2147483647, %v335
    %vm346 = vcmp.eq.f32.partialorder %v345, 8.507059e+37
    %v347 = vand.u32 %v335, 2147483648
    %v348 = vor.u32 1.1754944e-38, %v347
    %v349 = vsel %vm346, %v348, %v344
    %v350 = vmul.f32 %v328, %v349
    %v351 = vld [vmem:[%s2] sm:$0xff]
    %v352 = vld [vmem:[%s2 + $0x8] sm:$0xff]
    %v353 = vld [vmem:[%s2 + $0x10] sm:$0xff]
    %v354 = vld [vmem:[%s2 + $0x18] sm:$0xff]
    %v355 = vld [vmem:[%s2 + $0x20] sm:$0xff]
    %v356 = vld [vmem:[%s2 + $0x28] sm:$0xff]
    %v357 = vld [vmem:[%s2 + $0x30] sm:$0xff]
    %v358 = vld [vmem:[%s2 + $0x38] sm:$0xff]
    %v359 = vld [vmem:[%s2 + $0x40] sm:$0xff]
    %v360 = vld [vmem:[%s2 + $0x48] sm:$0xff]
    %v361 = vld [vmem:[%s2 + $0x50] sm:$0xff]
    %v362 = vld [vmem:[%s2 + $0x58] sm:$0xff]
    %v363 = vld [vmem:[%s2 + $0x60] sm:$0xff]
    %v364 = vld [vmem:[%s2 + $0x68] sm:$0xff]
    %v365 = vld [vmem:[%s2 + $0x70] sm:$0xff]
    %v366 = vld [vmem:[%s2 + $0x78] sm:$0xff]
    %v367 = vld [vmem:[%s2 + $0x80] sm:$0xff]
    %v368 = vld [vmem:[%s2 + $0x88] sm:$0xff]
    %v369 = vld [vmem:[%s2 + $0x90] sm:$0xff]
    %v370 = vld [vmem:[%s2 + $0x98] sm:$0xff]
    %v371 = vld [vmem:[%s2 + $0xa0] sm:$0xff]
    %v372 = vld [vmem:[%s2 + $0xa8] sm:$0xff]
    %v373 = vld [vmem:[%s2 + $0xb0] sm:$0xff]
    %v374 = vld [vmem:[%s2 + $0xb8] sm:$0xff]
    %v375 = vld [vmem:[%s2 + $0xc0] sm:$0xff]
    %v376 = vld [vmem:[%s2 + $0xc8] sm:$0xff]
    %v377 = vld [vmem:[%s2 + $0xd0] sm:$0xff]
    %v378 = vld [vmem:[%s2 + $0xd8] sm:$0xff]
    %v379 = vld [vmem:[%s2 + $0xe0] sm:$0xff]
    %v380 = vld [vmem:[%s2 + $0xe8] sm:$0xff]
    %v381 = vld [vmem:[%s2 + $0xf0] sm:$0xff]
    %v382 = vld [vmem:[%s2 + $0xf8] sm:$0xff]
    %v384 = vsel %vm318, %v350, 0
    %386 = vmatpush.msra.mxu0 0.0
    %387 = vmatpush.msra.mxu0 0.0
    %388 = vmatpush.msra.mxu0 0.0
    %389 = vmatpush.msra.mxu0 0.0
    %390 = vmatpush.msra.mxu0 0.0
    %391 = vmatpush.msra.mxu0 0.0
    %392 = vmatpush.msra.mxu0 0.0
    %393 = vmatpush.msra.mxu0 0.0
    %394 = vmatpush.msra.mxu0 0.0
    %395 = vmatpush.msra.mxu0 0.0
    %396 = vmatpush.msra.mxu0 0.0
    %397 = vmatpush.msra.mxu0 0.0
    %398 = vmatpush.msra.mxu0 %v375
    %399 = vmatpush.msra.mxu0 %v367
    %400 = vmatpush.msra.mxu0 %v359
    %401 = vmatpush.msra.mxu0 %v351
    %402 = vmatmul.f32.gmra.mxu0 %v384
    %v403 = vpop.f32.mrf.mxu0
    %v404 = vadd.f32 0.0, %v403
    %405 = vdwg.mxu0
    %406 = vmatpush.msra.mxu0 0.0
    %407 = vmatpush.msra.mxu0 0.0
    %408 = vmatpush.msra.mxu0 0.0
    %409 = vmatpush.msra.mxu0 0.0
    %410 = vmatpush.msra.mxu0 0.0
    %411 = vmatpush.msra.mxu0 0.0
    %412 = vmatpush.msra.mxu0 0.0
    %413 = vmatpush.msra.mxu0 0.0
    %414 = vmatpush.msra.mxu0 0.0
    %415 = vmatpush.msra.mxu0 0.0
    %416 = vmatpush.msra.mxu0 0.0
    %417 = vmatpush.msra.mxu0 0.0
    %418 = vmatpush.msra.mxu0 %v376
    %419 = vmatpush.msra.mxu0 %v368
    %420 = vmatpush.msra.mxu0 %v360
    %421 = vmatpush.msra.mxu0 %v352
    %422 = vmatmul.f32.gmra.mxu0 %v384
    %v423 = vpop.f32.mrf.mxu0
    %v424 = vadd.f32 0.0, %v423
    %425 = vdwg.mxu0
    %426 = vmatpush.msra.mxu0 0.0
    %427 = vmatpush.msra.mxu0 0.0
    %428 = vmatpush.msra.mxu0 0.0
    %429 = vmatpush.msra.mxu0 0.0
    %430 = vmatpush.msra.mxu0 0.0
    %431 = vmatpush.msra.mxu0 0.0
    %432 = vmatpush.msra.mxu0 0.0
    %433 = vmatpush.msra.mxu0 0.0
    %434 = vmatpush.msra.mxu0 0.0
    %435 = vmatpush.msra.mxu0 0.0
    %436 = vmatpush.msra.mxu0 0.0
    %437 = vmatpush.msra.mxu0 0.0
    %438 = vmatpush.msra.mxu0 %v377
    %439 = vmatpush.msra.mxu0 %v369
    %440 = vmatpush.msra.mxu0 %v361
    %441 = vmatpush.msra.mxu0 %v353
    %442 = vmatmul.f32.gmra.mxu0 %v384
    %v443 = vpop.f32.mrf.mxu0
    %v444 = vadd.f32 0.0, %v443
    %445 = vdwg.mxu0
    %446 = vmatpush.msra.mxu0 0.0
    %447 = vmatpush.msra.mxu0 0.0
    %448 = vmatpush.msra.mxu0 0.0
    %449 = vmatpush.msra.mxu0 0.0
    %450 = vmatpush.msra.mxu0 0.0
    %451 = vmatpush.msra.mxu0 0.0
    %452 = vmatpush.msra.mxu0 0.0
    %453 = vmatpush.msra.mxu0 0.0
    %454 = vmatpush.msra.mxu0 0.0
    %455 = vmatpush.msra.mxu0 0.0
    %456 = vmatpush.msra.mxu0 0.0
    %457 = vmatpush.msra.mxu0 0.0
    %458 = vmatpush.msra.mxu0 %v378
    %459 = vmatpush.msra.mxu0 %v370
    %460 = vmatpush.msra.mxu0 %v362
    %461 = vmatpush.msra.mxu0 %v354
    %462 = vmatmul.f32.gmra.mxu0 %v384
    %v463 = vpop.f32.mrf.mxu0
    %v464 = vadd.f32 0.0, %v463
    %465 = vdwg.mxu0
    %466 = vmatpush.msra.mxu0 0.0
    %467 = vmatpush.msra.mxu0 0.0
    %468 = vmatpush.msra.mxu0 0.0
    %469 = vmatpush.msra.mxu0 0.0
    %470 = vmatpush.msra.mxu0 0.0
    %471 = vmatpush.msra.mxu0 0.0
    %472 = vmatpush.msra.mxu0 0.0
    %473 = vmatpush.msra.mxu0 0.0
    %474 = vmatpush.msra.mxu0 0.0
    %475 = vmatpush.msra.mxu0 0.0
    %476 = vmatpush.msra.mxu0 0.0
    %477 = vmatpush.msra.mxu0 0.0
    %478 = vmatpush.msra.mxu0 %v379
    %479 = vmatpush.msra.mxu0 %v371
    %480 = vmatpush.msra.mxu0 %v363
    %481 = vmatpush.msra.mxu0 %v355
    %482 = vmatmul.f32.gmra.mxu0 %v384
    %v483 = vpop.f32.mrf.mxu0
    %v484 = vadd.f32 0.0, %v483
    %485 = vdwg.mxu0
    %486 = vmatpush.msra.mxu0 0.0
    %487 = vmatpush.msra.mxu0 0.0
    %488 = vmatpush.msra.mxu0 0.0
    %489 = vmatpush.msra.mxu0 0.0
    %490 = vmatpush.msra.mxu0 0.0
    %491 = vmatpush.msra.mxu0 0.0
    %492 = vmatpush.msra.mxu0 0.0
    %493 = vmatpush.msra.mxu0 0.0
    %494 = vmatpush.msra.mxu0 0.0
    %495 = vmatpush.msra.mxu0 0.0
    %496 = vmatpush.msra.mxu0 0.0
    %497 = vmatpush.msra.mxu0 0.0
    %498 = vmatpush.msra.mxu0 %v380
    %499 = vmatpush.msra.mxu0 %v372
    %500 = vmatpush.msra.mxu0 %v364
    %501 = vmatpush.msra.mxu0 %v356
    %502 = vmatmul.f32.gmra.mxu0 %v384
    %v503 = vpop.f32.mrf.mxu0
    %v504 = vadd.f32 0.0, %v503
    %505 = vdwg.mxu0
    %506 = vmatpush.msra.mxu0 0.0
    %507 = vmatpush.msra.mxu0 0.0
    %508 = vmatpush.msra.mxu0 0.0
    %509 = vmatpush.msra.mxu0 0.0
    %510 = vmatpush.msra.mxu0 0.0
    %511 = vmatpush.msra.mxu0 0.0
    %512 = vmatpush.msra.mxu0 0.0
    %513 = vmatpush.msra.mxu0 0.0
    %514 = vmatpush.msra.mxu0 0.0
    %515 = vmatpush.msra.mxu0 0.0
    %516 = vmatpush.msra.mxu0 0.0
    %517 = vmatpush.msra.mxu0 0.0
    %518 = vmatpush.msra.mxu0 %v381
    %519 = vmatpush.msra.mxu0 %v373
    %520 = vmatpush.msra.mxu0 %v365
    %521 = vmatpush.msra.mxu0 %v357
    %522 = vmatmul.f32.gmra.mxu0 %v384
    %v523 = vpop.f32.mrf.mxu0
    %v524 = vadd.f32 0.0, %v523
    %525 = vdwg.mxu0
    %526 = vmatpush.msra.mxu0 0.0
    %527 = vmatpush.msra.mxu0 0.0
    %528 = vmatpush.msra.mxu0 0.0
    %529 = vmatpush.msra.mxu0 0.0
    %530 = vmatpush.msra.mxu0 0.0
    %531 = vmatpush.msra.mxu0 0.0
    %532 = vmatpush.msra.mxu0 0.0
    %533 = vmatpush.msra.mxu0 0.0
    %534 = vmatpush.msra.mxu0 0.0
    %535 = vmatpush.msra.mxu0 0.0
    %536 = vmatpush.msra.mxu0 0.0
    %537 = vmatpush.msra.mxu0 0.0
    %538 = vmatpush.msra.mxu0 %v382
    %539 = vmatpush.msra.mxu0 %v374
    %540 = vmatpush.msra.mxu0 %v366
    %541 = vmatpush.msra.mxu0 %v358
    %542 = vmatmul.f32.gmra.mxu0 %v384
    %v543 = vpop.f32.mrf.mxu0
    %v544 = vadd.f32 0.0, %v543
    %545 = vdwg.mxu0
    %v546 = vmul.f32 %v404, %v19
    %v547 = vmul.f32 %v424, %v20
    %v548 = vmul.f32 %v444, %v21
    %v549 = vmul.f32 %v464, %v22
    %v550 = vmul.f32 %v484, %v23
    %v551 = vmul.f32 %v504, %v24
    %v552 = vmul.f32 %v524, %v25
    %v553 = vmul.f32 %v544, %v26
    %v554 = vrot.slane %v546, 4
    %v555 = vadd.f32 %v546, %v554
    %v556 = vrot.slane %v555, 2
    %v557 = vadd.f32 %v555, %v556
    %v558 = vrot.slane %v557, 1
    %v559 = vadd.f32 %v557, %v558
    %v560 = vrot.slane %v547, 4
    %v561 = vadd.f32 %v547, %v560
    %v562 = vrot.slane %v561, 2
    %v563 = vadd.f32 %v561, %v562
    %v564 = vrot.slane %v563, 1
    %v565 = vadd.f32 %v563, %v564
    %v566 = vrot.slane %v548, 4
    %v567 = vadd.f32 %v548, %v566
    %v568 = vrot.slane %v567, 2
    %v569 = vadd.f32 %v567, %v568
    %v570 = vrot.slane %v569, 1
    %v571 = vadd.f32 %v569, %v570
    %v572 = vrot.slane %v549, 4
    %v573 = vadd.f32 %v549, %v572
    %v574 = vrot.slane %v573, 2
    %v575 = vadd.f32 %v573, %v574
    %v576 = vrot.slane %v575, 1
    %v577 = vadd.f32 %v575, %v576
    %v578 = vrot.slane %v550, 4
    %v579 = vadd.f32 %v550, %v578
    %v580 = vrot.slane %v579, 2
    %v581 = vadd.f32 %v579, %v580
    %v582 = vrot.slane %v581, 1
    %v583 = vadd.f32 %v581, %v582
    %v584 = vrot.slane %v551, 4
    %v585 = vadd.f32 %v551, %v584
    %v586 = vrot.slane %v585, 2
    %v587 = vadd.f32 %v585, %v586
    %v588 = vrot.slane %v587, 1
    %v589 = vadd.f32 %v587, %v588
    %v590 = vrot.slane %v552, 4
    %v591 = vadd.f32 %v552, %v590
    %v592 = vrot.slane %v591, 2
    %v593 = vadd.f32 %v591, %v592
    %v594 = vrot.slane %v593, 1
    %v595 = vadd.f32 %v593, %v594
    %v596 = vrot.slane %v553, 4
    %v597 = vadd.f32 %v553, %v596
    %v598 = vrot.slane %v597, 2
    %v599 = vadd.f32 %v597, %v598
    %v600 = vrot.slane %v599, 1
    %v601 = vadd.f32 %v599, %v600
    %v610 = vrot.slane %v565, 7
    %v611 = vrot.slane %v571, 6
    %v612 = vrot.slane %v577, 5
    %v613 = vrot.slane %v583, 4
    %v614 = vrot.slane %v589, 3
    %v615 = vrot.slane %v595, 2
    %v616 = vrot.slane %v601, 1
    %vm617 = vcmask 1040384
    %v618 = vsel %vm617, %v559, %v610
    %vm619 = vcmask 1042434
    %v620 = vsel %vm619, %v611, %v612
    %vm621 = vcmask 1041408
    %v622 = vsel %vm621, %v618, %v620
    %vm623 = vcmask 1044484
    %v624 = vsel %vm623, %v613, %v614
    %vm625 = vcmask 1046534
    %v626 = vsel %vm625, %v615, %v616
    %vm627 = vcmask 1045508
    %v628 = vsel %vm627, %v624, %v626
    %vm629 = vcmask 1043456
    %v630 = vsel %vm629, %v622, %v628
    %632 = vst [vmem:[#allocation3] sm:$0xff] %v630
    // Predicated region
    $region18: #{tpu_custom_call.1} parent=1 // pred_check
      _
    $region19: #{tpu_custom_call.1} parent=1 // pred_check_branch
      %634 = sbr.rel (0) target = $region21
    $region20: #{tpu_custom_call.1} parent=1 // pred_region
      %636 = vsyncadd [#allocation4], 0
      %s638 = sshll.u32 [#allocation3], 4
      %s639 = int_to_ptr.vmem [resolvable:$true] %s638
      %s640 = sshll.u32 %s4, 4
      %s641 = int_to_ptr.hbm [resolvable:$true] %s640
      %643 = dma.vmem_to_hbm [thread:$0]  %s639, 128, %s641, [#allocation4]
    $region21: #{tpu_custom_call.1} parent=1 // pred_fallthru
      _
    // Predicated region
    $region22: #{tpu_custom_call.1} parent=1 // pred_check
      _
    $region23: #{tpu_custom_call.1} parent=1 // pred_check_branch
      %645 = sbr.rel (0) target = $region25
    $region24: #{tpu_custom_call.1} parent=1 // pred_region
      %647 = dma.done [#allocation4], 128
    $region25: #{tpu_custom_call.1} parent=1 // pred_fallthru
      _
    %648 = vsyncpa [#allocation4], 1

</llo_original>
